<compile_context>
chip_gen: v7x
topology: tpu7x:2x2x1
jax: 0.10.0
libtpu: 0.0.40
codegen_flags: <defaults>
</compile_context>

<pallas_src>
import numpy as np
import jax
import jax.numpy as jnp
from jax import lax
from jax.experimental import pallas as pl
from jax.experimental.pallas import tpu as pltpu

BN_EPS = 1e-5
MATMUL_DTYPE = jnp.bfloat16          # MXU operand dtype (accumulate in f32)


def _vmem_limit_bytes():
    # v7x: 64 MiB physical VMEM -> keep scoped limit ~48 MiB; v5e/v6e: 128 MiB
    # physical -> raise to 96 MiB so larger tiles stay double-buffered.
    try:
        cap = int(pltpu.get_tpu_info().vmem_capacity_bytes)
    except Exception:
        cap = 64 << 20
    return int(min(max(cap - (16 << 20), 32 << 20), 96 << 20))


VMEM_LIMIT = _vmem_limit_bytes()


def _const_spec(shape):
    # Block-invariant index map: Pallas fetches these once per batch row.
    # TODO(synk): add pipeline_mode=pl.Buffered(1) (single buffer for constants)
    # once single-buffering is confirmed supported at top-level pallas_call.
    return pl.BlockSpec(shape, lambda b, i: (0,) * len(shape))


def _pick_group(n_near, bytes_per_neighbor, cap):
    """Largest divisor of K in {8,4,2,1} whose per-group temps fit `cap`."""
    for cand in (8, 4, 2):
        if n_near % cand == 0 and cand * bytes_per_neighbor <= cap:
            return cand
    return 1


# ---------------------------------------------------------------- kNN distance
def _neg_dist_kernel(q_ref, allt_ref, sqq_ref, sqa_ref, out_ref):
    q = q_ref[0]                                            # (tile, 3)  f32
    at = allt_ref[0]                                        # (3, N)     f32
    # Precision.HIGHEST: exact-ish f32 so near-tie neighbors keep their order.
    inner = jnp.dot(q, at, preferred_element_type=jnp.float32,
                    precision=lax.Precision.HIGHEST)        # (tile, N)
    # Negated squared distance: top_k(largest) == nearest, no extra -dist pass.
    out_ref[0] = 2.0 * inner - sqq_ref[0] - sqa_ref[0]


def pairwise_neg_distance(xyz, tile_n=None):
    """Returns -(pairwise squared distance), shape (B, N, N)."""
    B, N, _ = xyz.shape
    if tile_n is None:
        tile_n = min(N, 512)
    assert N % tile_n == 0 and tile_n % 8 == 0
    xyz = xyz.astype(jnp.float32)
    xyz_t = jnp.transpose(xyz, (0, 2, 1))                   # (B, 3, N) lane-dense
    sq = jnp.sum(xyz * xyz, axis=-1)                        # squared norms: once
    sq_rows = sq[:, :, None]                                # (B, N, 1)
    sq_cols = sq[:, None, :]                                # (B, 1, N)
    return pl.pallas_call(
        _neg_dist_kernel,
        out_shape=jax.ShapeDtypeStruct((B, N, N), jnp.float32),
        grid=(B, N // tile_n),
        in_specs=[pl.BlockSpec((1, tile_n, 3), lambda b, i: (b, i, 0)),
                  pl.BlockSpec((1, 3, N), lambda b, i: (b, 0, 0)),
                  pl.BlockSpec((1, tile_n, 1), lambda b, i: (b, i, 0)),
                  pl.BlockSpec((1, 1, N), lambda b, i: (b, 0, 0))],
        out_specs=pl.BlockSpec((1, tile_n, N), lambda b, i: (b, i, 0)),
        compiler_params=pltpu.CompilerParams(
            dimension_semantics=("parallel", "parallel"),
            vmem_limit_bytes=VMEM_LIMIT),
    )(xyz, xyz_t, sq_rows, sq_cols)


# ------------------------------- pass 1: fused gather (+ layer-0 BN partials)
def _make_gather_kernel(n_near, n_points, tile_n, group, c0):
    def kernel(idx_ref, qxyz_ref, proj0_ref, w0x_ref, slab_ref, stats_ref):
        idx_tile = idx_ref[0]                               # (tile, K) int32
        qxyz = qxyz_ref[0]                                  # (tile, 3) bf16
        proj0 = proj0_ref[0]                                # (N, C0)   bf16
        # layer-0 centering term is neighbor-independent: hoisted out of the loop
        center = jnp.dot(qxyz, w0x_ref[...],
                         preferred_element_type=jnp.float32)       # (tile, C0)
        if group > 1:
            center = jnp.concatenate([center] * group, axis=0)     # (g*tile, C0)
        # (1, N) iota; the compare broadcasts against (tile, 1) -> no big temp.
        lane_iota = lax.broadcasted_iota(jnp.int32, (1, n_points), 1)

        acc_s = jnp.zeros((1, c0), jnp.float32)
        acc_ss = jnp.zeros((1, c0), jnp.float32)
        # TODO(synk): for very large K switch to lax.fori_loop over groups.
        for k0 in range(0, n_near, group):
            oh = [(idx_tile[:, k:k + 1] == lane_iota).astype(MATMUL_DTYPE)
                  for k in range(k0, k0 + group)]
            onehot = oh[0] if group == 1 else jnp.concatenate(oh, axis=0)
            # One MXU call gathers g neighbors for the whole tile, fused with
            # the layer-0 1x1 conv (bias cancels against the BN mean).
            # TODO(synk): try jnp.take on the VMEM-resident proj0 (dynamic
            # gather) as an O(C0)-per-row alternative if it lowers.
            y = jnp.dot(onehot, proj0,
                        preferred_element_type=jnp.float32) - center
            y_bf = y.astype(MATMUL_DTYPE)
            slab_ref[0, k0:k0 + group] = y_bf.reshape(group, tile_n, c0)
            yf = y_bf.astype(jnp.float32)     # stats on what the readers will see
            acc_s = acc_s + jnp.sum(yf, axis=0, keepdims=True)
            acc_ss = acc_ss + jnp.sum(yf * yf, axis=0, keepdims=True)
        stats_ref[0, 0] = jnp.concatenate([acc_s, acc_ss], axis=0)   # (2, C0)
    return kernel


def _run_gather_pass(idx, qxyz, proj0, w0x, tile_n):
    B, N, K = idx.shape
    T = N // tile_n
    c0 = proj0.shape[-1]
    group = _pick_group(K, tile_n * N * 2, cap=8 << 20)      # one-hot bf16 cap
    kernel = _make_gather_kernel(K, N, tile_n, group, c0)
    # TODO(synk): the cached slab stores lanes = C0 (<128 for small MLPs) ->
    # partially masked vst; acceptable since it is written exactly once.
    return pl.pallas_call(
        kernel,
        out_shape=(jax.ShapeDtypeStruct((B, K, N, c0), MATMUL_DTYPE),
                   jax.ShapeDtypeStruct((B, T, 2, c0), jnp.float32)),
        grid=(B, T),
        in_specs=[pl.BlockSpec((1, tile_n, K), lambda b, i: (b, i, 0)),
                  pl.BlockSpec((1, tile_n, 3), lambda b, i: (b, i, 0)),
                  pl.BlockSpec((1, N, c0), lambda b, i: (b, 0, 0)),
                  _const_spec(w0x.shape)],
        out_specs=(pl.BlockSpec((1, K, tile_n, c0), lambda b, i: (b, 0, i, 0)),
                   pl.BlockSpec((1, 1, 2, c0), lambda b, i: (b, i, 0, 0))),
        compiler_params=pltpu.CompilerParams(
            dimension_semantics=("parallel", "parallel"),
            vmem_limit_bytes=VMEM_LIMIT),
    )(idx, qxyz, proj0, w0x)


# ------------------------- passes 2..: MLP on the cached slab (stats / output)
def _make_mlp_kernel(n_w, n_aff, n_near, tile_n, group, mode, out_c, c0):
    assert mode in ("stats", "out")
    assert n_aff == (n_w if mode == "stats" else n_w + 1)

    def kernel(*refs):
        slab_ref = refs[0]                                   # (1, K, tile, C0)
        w_refs = refs[1:1 + n_w]
        aff = refs[1 + n_w:1 + n_w + 2 * n_aff]
        out_ref = refs[1 + n_w + 2 * n_aff]

        acc_s = acc_ss = run_max = None
        for k0 in range(0, n_near, group):
            # g neighbors stacked along rows -> bigger M per MXU call.
            y = slab_ref[0, k0:k0 + group].reshape(
                group * tile_n, c0).astype(jnp.float32)
            x = None
            for m in range(n_w + 1):
                if m > 0:
                    y = jnp.dot(x.astype(MATMUL_DTYPE), w_refs[m - 1][...],
                                preferred_element_type=jnp.float32)
                if m < n_aff:                # BN (precomputed scale/shift) + ReLU
                    x = jnp.maximum(y * aff[2 * m][...] + aff[2 * m + 1][...], 0.0)
            if mode == "stats":
                s = jnp.sum(y, axis=0, keepdims=True)
                ss = jnp.sum(y * y, axis=0, keepdims=True)
                acc_s = s if acc_s is None else acc_s + s
                acc_ss = ss if acc_ss is None else acc_ss + ss
            else:
                gm = jnp.max(x.reshape(group, tile_n, out_c), axis=0)
                run_max = gm if run_max is None else jnp.maximum(run_max, gm)

        if mode == "stats":
            out_ref[0, 0] = jnp.concatenate([acc_s, acc_ss], axis=0)
        else:
            out_ref[0] = run_max.astype(out_ref.dtype)
    return kernel


def _run_mlp_pass(slab, ws, affines, mode, out_c, tile_n, n_near):
    B, K, N, c0 = slab.shape
    T = N // tile_n
    n_w = len(ws)
    n_aff = len(affines) // 2
    c_max = max([c0, out_c] + [int(w.shape[1]) for w in ws])
    group = _pick_group(n_near, tile_n * c_max * 4, cap=4 << 20)
    kernel = _make_mlp_kernel(n_w, n_aff, n_near, tile_n, group, mode, out_c, c0)

    in_specs = [pl.BlockSpec((1, K, tile_n, c0), lambda b, i: (b, 0, i, 0))]
    in_specs += [_const_spec(w.shape) for w in ws]
    in_specs += [_const_spec(a.shape) for a in affines]

    if mode == "stats":
        out_shape = jax.ShapeDtypeStruct((B, T, 2, out_c), jnp.float32)
        out_spec = pl.BlockSpec((1, 1, 2, out_c), lambda b, i: (b, i, 0, 0))
    else:
        out_shape = jax.ShapeDtypeStruct((B, N, out_c), MATMUL_DTYPE)
        out_spec = pl.BlockSpec((1, tile_n, out_c), lambda b, i: (b, i, 0))

    return pl.pallas_call(
        kernel,
        out_shape=out_shape,
        grid=(B, T),
        in_specs=in_specs,
        out_specs=out_spec,
        compiler_params=pltpu.CompilerParams(
            dimension_semantics=("parallel", "parallel"),
            vmem_limit_bytes=VMEM_LIMIT),
    )(slab, *ws, *affines)


# --------------------------------------------------------------------- wrapper
def set_abstraction_forward(xyz, points, params, n_near, *, tile_n=None):
    """SetAbstraction.forward.  Returns (new_points (B, N, mlp[-1]), knn idx)."""
    B, N, _ = xyz.shape
    xyz = xyz.astype(jnp.float32)
    points = points.astype(jnp.float32)
    if tile_n is None:
        tile_n = min(N, 256)
    assert N % tile_n == 0 and tile_n % 8 == 0
    K = n_near

    # ---- kNN (negated distances consumed directly by top_k) -----------------
    neg_dist = pairwise_neg_distance(xyz)
    # TODO(synk): torch.topk has no clean Pallas lowering; exact selection stays
    # in XLA (lax.top_k).  lax.approx_max_k is a drop-in speedup for large N.
    _, idx = lax.top_k(neg_dist, n_near + 1)
    idx = idx[:, :, 1:]                                     # drop self -> (B,N,K)

    # ---- parameter prep ------------------------------------------------------
    n_layers = len(params)
    c_last = params[-1][0].shape[1]
    c_pad = -(-c_last // 128) * 128                         # lane-dense output
    padded = []
    for li, (w, b, gamma, beta) in enumerate(params):
        if li == n_layers - 1 and c_pad != c_last:
            pad = c_pad - c_last
            w = jnp.pad(w, ((0, 0), (0, pad)))
            gamma = jnp.pad(gamma, (0, pad))                # padded channels -> 0
            beta = jnp.pad(beta, (0, pad))
        padded.append((w, b, gamma, beta))

    w0 = padded[0][0]                                       # (3+D, C0)
    c0 = w0.shape[1]
    # Fold the neighbor-independent part of layer 0 into a per-point projection:
    #   onehot @ (table @ W0) == (gathered [xyz | fea]) @ W0
    proj0 = (jnp.einsum("bnc,cd->bnd", xyz, w0[:3],
                        precision=lax.Precision.HIGHEST)
             + jnp.einsum("bnc,cd->bnd", points, w0[3:],
                          precision=lax.Precision.HIGHEST)).astype(MATMUL_DTYPE)
    w0x = w0[:3].astype(MATMUL_DTYPE)                       # centering projection
    ws = [w.astype(MATMUL_DTYPE) for (w, _, _, _) in padded[1:]]
    qxyz = xyz.astype(MATMUL_DTYPE)

    count = B * N * K

    def finalize(partial, gamma, beta):
        # Global training-mode BN stats (biased variance) from per-tile partials.
        # NOTE: E[y^2]-E[y]^2 in f32; clamped at 0 (fine at these magnitudes).
        sums = jnp.sum(partial, axis=(0, 1))                # (2, C)
        mean = sums[0] / count
        var = jnp.maximum(sums[1] / count - mean * mean, 0.0)
        scale = gamma * lax.rsqrt(var + BN_EPS)
        shift = beta - mean * scale
        return [scale.reshape(1, -1).astype(jnp.float32),
                shift.reshape(1, -1).astype(jnp.float32)]

    # ---- pass 1: one-hot gather + folded layer-0 conv, cached to HBM once ----
    slab, stats0 = _run_gather_pass(idx, qxyz, proj0, w0x, tile_n)
    affines = finalize(stats0, padded[0][2], padded[0][3])  # scale_0, shift_0

    # ---- passes 2..L: BN statistics of deeper layers (read slab, no re-gather)
    for li in range(1, n_layers):
        c_l = padded[li][0].shape[1]
        partial = _run_mlp_pass(slab, ws[:li], affines, "stats", c_l, tile_n, K)
        affines += finalize(partial, padded[li][2], padded[li][3])

    # ---- final pass: full MLP + max-over-K, lane-dense bf16 output -----------
    out = _run_mlp_pass(slab, ws, affines, "out", c_pad, tile_n, K)
    return out[..., :c_last].astype(jnp.float32), idx


# ------------------------------------------------------------ pure-JAX reference
def _reference_forward(xyz, points, params, idx):
    gather = jax.vmap(lambda a, ind: a[ind])
    gx = gather(xyz, idx) - xyz[:, :, None, :]              # (B,N,K,3)
    gf = gather(points, idx)                                # (B,N,K,D)
    x = jnp.concatenate([gx, gf], axis=-1).astype(jnp.float32)
    for (w, b, gamma, beta) in params:
        y = jnp.einsum("bnkc,cd->bnkd", x, w,
                       precision=lax.Precision.HIGHEST) + b
        mean = jnp.mean(y, axis=(0, 1, 2))
        var = jnp.mean(jnp.square(y - mean), axis=(0, 1, 2))
        x = jnp.maximum((y - mean) * lax.rsqrt(var + BN_EPS) * gamma + beta, 0.0)
    return jnp.max(x, axis=2)                               # (B, N, C_out)


if __name__ == "__main__":
    B, N, D = 2, 128, 4          # batch, points, feature channels
    n_near = 8                   # K nearest neighbors
    mlp = (16, 32)               # SetAbstraction(n_near, in_channel=3+D, mlp)
    in_channel = 3 + D

    key = jax.random.PRNGKey(0)
    key, k_xyz, k_fea = jax.random.split(key, 3)
    xyz = jax.random.normal(k_xyz, (B, N, 3), jnp.float32)
    points = jax.random.normal(k_fea, (B, N, D), jnp.float32)

    params = []
    last = in_channel
    for out_ch in mlp:
        key, kw, kb = jax.random.split(key, 3)
        w = jax.random.normal(kw, (last, out_ch), jnp.float32) / np.sqrt(last)
        b = jax.random.normal(kb, (out_ch,), jnp.float32) * 0.1
        gamma = jnp.ones((out_ch,), jnp.float32)            # fresh BatchNorm2d
        beta = jnp.zeros((out_ch,), jnp.float32)
        params.append((w, b, gamma, beta))
        last = out_ch

    # distance kernel check (tiled path, negated-distance convention)
    neg = jax.block_until_ready(pairwise_neg_distance(xyz, tile_n=64))
    sq = jnp.sum(xyz * xyz, axis=-1)
    ref_dist = (-2.0 * jnp.einsum("bnd,bmd->bnm", xyz, xyz,
                                  precision=lax.Precision.HIGHEST)
                + sq[:, :, None] + sq[:, None, :])
    if not np.allclose(np.asarray(neg), np.asarray(-ref_dist),
                       atol=1e-3, rtol=1e-3):
        raise AssertionError("pairwise distance mismatch vs reference")

    out, idx = set_abstraction_forward(xyz, points, params, n_near, tile_n=64)
    out = jax.block_until_ready(out)
    assert out.shape == (B, N, mlp[-1]), out.shape

    ref = _reference_forward(xyz, points, params, idx)
    err = float(np.max(np.abs(np.asarray(out) - np.asarray(ref))))
    # bf16 matmul operands + bf16 cached activations vs a pure-f32 reference.
    if not np.allclose(np.asarray(out), np.asarray(ref), atol=8e-2, rtol=8e-2):
        raise AssertionError(
            f"SetAbstraction output mismatch vs reference (max abs err {err:.4f})")
    print("KERNEL_OK")
</pallas_src>

<mosaic_0001>
module attributes {stable_mosaic.version = 11 : i64} {
  func.func @_neg_dist_kernel(%arg0: i32, %arg1: i32, %arg2: memref<1x64x3xf32, #tpu.memory_space<vmem>>, %arg3: memref<1x3x128xf32, #tpu.memory_space<vmem>>, %arg4: memref<1x64x1xf32, #tpu.memory_space<vmem>>, %arg5: memref<1x1x128xf32, #tpu.memory_space<vmem>>, %arg6: memref<1x64x128xf32, #tpu.memory_space<vmem>>) attributes {dimension_semantics = [#tpu.dimension_semantics<parallel>, #tpu.dimension_semantics<parallel>], iteration_bounds = array<i64: 2, 2>, scalar_prefetch = 0 : i64, scratch_operands = 0 : i64, tpu.core_type = #tpu.core_type<tc>, window_params = [{transform_indices = @transform_0, window_bounds = array<i64: 1, 64, 3>}, {transform_indices = @transform_1, window_bounds = array<i64: 1, 3, 128>}, {transform_indices = @transform_2, window_bounds = array<i64: 1, 64, 1>}, {transform_indices = @transform_3, window_bounds = array<i64: 1, 1, 128>}, {transform_indices = @transform_4, window_bounds = array<i64: 1, 64, 128>}]} {
    %c0 = arith.constant 0 : index
    %c0_0 = arith.constant 0 : index
    %c0_1 = arith.constant 0 : index
    %0 = vector.load %arg2[%c0, %c0_0, %c0_1] : memref<1x64x3xf32, #tpu.memory_space<vmem>>, vector<1x64x3xf32>
    %1 = vector.shape_cast %0 : vector<1x64x3xf32> to vector<64x3xf32>
    %c0_2 = arith.constant 0 : index
    %c0_3 = arith.constant 0 : index
    %c0_4 = arith.constant 0 : index
    %2 = vector.load %arg3[%c0_2, %c0_3, %c0_4] : memref<1x3x128xf32, #tpu.memory_space<vmem>>, vector<1x3x128xf32>
    %3 = vector.shape_cast %2 : vector<1x3x128xf32> to vector<3x128xf32>
    %cst = arith.constant dense<0.000000e+00> : vector<64x128xf32>
    %4 = tpu.matmul %1, %3, %cst {dimension_numbers = #tpu.dot_dimension_numbers<[1], [0], [0], [1], [0, 0, 1, 1], [], []>, precision = #tpu.contract_precision<fp32>} : vector<64x3xf32>, vector<3x128xf32>, vector<64x128xf32> -> vector<64x128xf32>
    %cst_5 = arith.constant 2.000000e+00 : f32
    %5 = vector.broadcast %cst_5 : f32 to vector<64x128xf32>
    %6 = arith.mulf %5, %4 : vector<64x128xf32>
    %c0_6 = arith.constant 0 : index
    %c0_7 = arith.constant 0 : index
    %c0_8 = arith.constant 0 : index
    %7 = vector.load %arg4[%c0_6, %c0_7, %c0_8] : memref<1x64x1xf32, #tpu.memory_space<vmem>>, vector<1x64x1xf32>
    %8 = vector.shape_cast %7 : vector<1x64x1xf32> to vector<64x1xf32>
    %9 = vector.broadcast %8 : vector<64x1xf32> to vector<64x128xf32>
    %10 = arith.subf %6, %9 : vector<64x128xf32>
    %c0_9 = arith.constant 0 : index
    %c0_10 = arith.constant 0 : index
    %c0_11 = arith.constant 0 : index
    %11 = vector.load %arg5[%c0_9, %c0_10, %c0_11] : memref<1x1x128xf32, #tpu.memory_space<vmem>>, vector<1x1x128xf32>
    %12 = vector.shape_cast %11 : vector<1x1x128xf32> to vector<1x128xf32>
    %13 = vector.broadcast %12 : vector<1x128xf32> to vector<64x128xf32>
    %14 = arith.subf %10, %13 : vector<64x128xf32>
    %c0_12 = arith.constant 0 : index
    %c0_13 = arith.constant 0 : index
    %c0_14 = arith.constant 0 : index
    %15 = vector.load %arg6[%c0_12, %c0_13, %c0_14] : memref<1x64x128xf32, #tpu.memory_space<vmem>>, vector<1x64x128xf32>
    %16 = vector.shape_cast %15 : vector<1x64x128xf32> to vector<64x128xf32>
    %17 = vector.shape_cast %14 : vector<64x128xf32> to vector<1x64x128xf32>
    tpu.vector_store %arg6[%c0_12, %c0_13, %c0_14], %17 {strides = array<i32>} : memref<1x64x128xf32, #tpu.memory_space<vmem>>, vector<1x64x128xf32>,
    return
  }
  func.func @transform_0(%arg0: i32, %arg1: i32) -> (i32, i32, i32) {
    %c0_i32 = arith.constant 0 : i32
    %c0_i32_0 = arith.constant 0 : i32
    return %arg0, %arg1, %c0_i32 : i32, i32, i32
  }
  func.func @transform_1(%arg0: i32, %arg1: i32) -> (i32, i32, i32) {
    %c0_i32 = arith.constant 0 : i32
    %c0_i32_0 = arith.constant 0 : i32
    %c0_i32_1 = arith.constant 0 : i32
    return %arg0, %c0_i32, %c0_i32_0 : i32, i32, i32
  }
  func.func @transform_2(%arg0: i32, %arg1: i32) -> (i32, i32, i32) {
    %c0_i32 = arith.constant 0 : i32
    %c0_i32_0 = arith.constant 0 : i32
    return %arg0, %arg1, %c0_i32 : i32, i32, i32
  }
  func.func @transform_3(%arg0: i32, %arg1: i32) -> (i32, i32, i32) {
    %c0_i32 = arith.constant 0 : i32
    %c0_i32_0 = arith.constant 0 : i32
    %c0_i32_1 = arith.constant 0 : i32
    return %arg0, %c0_i32, %c0_i32_0 : i32, i32, i32
  }
  func.func @transform_4(%arg0: i32, %arg1: i32) -> (i32, i32, i32) {
    %c0_i32 = arith.constant 0 : i32
    %c0_i32_0 = arith.constant 0 : i32
    return %arg0, %arg1, %c0_i32 : i32, i32, i32
  }
}

</mosaic_0001>

<llo_original>
// kernel: tpu_custom_call.1
$region0: #{tpu_custom_call.1}
  #allocation0 [shape = 'u32[]', space=smem, size = 0x4, offset = 0x4, fixed_abs, tag = 'smem constant byte address 0x4 - core index']
  #allocation1 [shape = 'u32[144,128]{1,0:T(1,128)}', space=vmem, size = 0x12000, scoped, tag = 'internal scratch']
  %s0 = inlined_call_operand.vmem [shape: f32[2,128,3], index: 0, kind: input, shape index: {}]
  %s1 = inlined_call_operand.vmem [shape: f32[2,3,128], index: 1, kind: input, shape index: {}]
  %s2 = inlined_call_operand.vmem [shape: f32[2,128,1], index: 2, kind: input, shape index: {}]
  %s3 = inlined_call_operand.vmem [shape: f32[2,1,128], index: 3, kind: input, shape index: {}]
  %s4 = inlined_call_operand.hbm [shape: f32[2,128,128], index: 4, kind: output, shape index: {}]
  %s5 = sld [smem:[#allocation0]]
  $region49: #{tpu_custom_call.1} parent=0
    _
  %s7 = ssub.s32 1, %s5
  %s8 = scalar_select 0, %s7, %s5
  $region1: #{tpu_custom_call.1} parent=0
    #allocation2 [shape = 'u8[65536]{0}', space=vmem, size = 0x10000, scoped, tag = 'output window, operand 0']
    #allocation3 [shape = 's32[2]{0}', space=sflag, size = 0x8, scoped, tag = 'scoped memory for tpu_custom_call.1']
    %9 = vsyncpa [#allocation3], 0
    %s10 = scalar_lea.sflag [#allocation3], 1
    %11 = vsyncpa %s10, 0
    loop: start=0, step=1, limit=6
    $region2: #{tpu_custom_call.1} parent=1 // loop_pre_header
      _
    $region3: #{tpu_custom_call.1} parent=1 // loop_header
      %s13 = sphi 0, %s17
      %p14 = scmp.ge.s32.totalorder %s13, 6
      %s20 = sphi 0, %s32
      %s21 = sphi 0, %s28
      %s22 = sphi 0, %s20
      %s23 = sphi 0, %s21
      %s24 = sphi 0, %s22
      %s25 = sphi 0, %s23
      %s37 = sphi 0, %s39
      %s40 = sphi 0, %s37
      %s41 = sphi 0, %s40
      %s57 = sphi 0, %s41
      %s63 = sphi 0, %s65
      %s66 = sphi 0, %s63
      %s67 = sphi 0, %s66
      %s83 = sphi 0, %s67
      %s91 = sphi 0, %s93
      %s94 = sphi 0, %s91
      %s95 = sphi 0, %s94
      %s111 = sphi 0, %s95
      %s117 = sphi 0, %s119
      %s120 = sphi 0, %s117
      %s121 = sphi 0, %s120
      %s137 = sphi 0, %s121
      %s145 = sphi 0, %s147
      %s148 = sphi 0, %s145
      %s149 = sphi 0, %s148
      %s165 = sphi 0, %s149
    $region4: #{tpu_custom_call.1} parent=1 // loop_header_branch
      %16 = sbr.rel (%p14) target = $region8
    $region5: #{tpu_custom_call.1} parent=1 // loop_body
      %s18 = ssub.s32 %s13, 1
      %s19 = ssub.s32 %s13, 2
      %s26 = sadd.s32 1, %s21
      %p27 = scmp.ge.s32.totalorder %s26, 2
      %s28 = scalar_select %p27, 0, %s26
      %s29 = sadd.s32 1, %s20
      %s30 = scalar_select %p27, %s29, %s20
      %p31 = scmp.ge.s32.totalorder %s30, 2
      %s32 = scalar_select %p31, 0, %s30
      %s33 = ssub.s32 %s20, %s32
      %s34 = ssub.s32 %s21, %s28
      %s35 = sor.u32 %s33, %s34
      %p36 = scmp.eq.s32.totalorder %s35, 0
      %s38 = sadd.s32 %s37, 1
      %s39 = scalar_select %p36, %s37, %s38
      %p42 = pneg %p36
      %p43 = scmp.eq.s32.totalorder %s13, 3
      %p44 = por %p42, %p43
      %p45 = scmp.ne.s32.totalorder %s37, %s40
      %p46 = scmp.eq.s32.totalorder %s13, 0
      %p47 = por %p45, %p46
      %p48 = scmp.ne.s32.totalorder %s37, %s40
      %p49 = scmp.eq.s32.totalorder %s18, 3
      %p50 = por %p48, %p49
      %p51 = scmp.ne.s32.totalorder %s40, %s41
      %p52 = scmp.eq.s32.totalorder %s18, 0
      %p53 = por %p51, %p52
      %p54 = scmp.ne.s32.totalorder %s40, %s41
      %p55 = scmp.eq.s32.totalorder %s19, 3
      %p56 = por %p54, %p55
      %p58 = scmp.ne.s32.totalorder %s41, %s57
      %p59 = scmp.eq.s32.totalorder %s19, 0
      %p60 = por %p58, %p59
      %s61 = ssub.s32 %s20, %s32
      %p62 = scmp.eq.s32.totalorder %s61, 0
      %s64 = sadd.s32 %s63, 1
      %s65 = scalar_select %p62, %s63, %s64
      %p68 = pneg %p62
      %p69 = scmp.eq.s32.totalorder %s13, 3
      %p70 = por %p68, %p69
      %p71 = scmp.ne.s32.totalorder %s63, %s66
      %p72 = scmp.eq.s32.totalorder %s13, 0
      %p73 = por %p71, %p72
      %p74 = scmp.ne.s32.totalorder %s63, %s66
      %p75 = scmp.eq.s32.totalorder %s18, 3
      %p76 = por %p74, %p75
      %p77 = scmp.ne.s32.totalorder %s66, %s67
      %p78 = scmp.eq.s32.totalorder %s18, 0
      %p79 = por %p77, %p78
      %p80 = scmp.ne.s32.totalorder %s66, %s67
      %p81 = scmp.eq.s32.totalorder %s19, 3
      %p82 = por %p80, %p81
      %p84 = scmp.ne.s32.totalorder %s67, %s83
      %p85 = scmp.eq.s32.totalorder %s19, 0
      %p86 = por %p84, %p85
      %s87 = ssub.s32 %s20, %s32
      %s88 = ssub.s32 %s21, %s28
      %s89 = sor.u32 %s87, %s88
      %p90 = scmp.eq.s32.totalorder %s89, 0
      %s92 = sadd.s32 %s91, 1
      %s93 = scalar_select %p90, %s91, %s92
      %p96 = pneg %p90
      %p97 = scmp.eq.s32.totalorder %s13, 3
      %p98 = por %p96, %p97
      %p99 = scmp.ne.s32.totalorder %s91, %s94
      %p100 = scmp.eq.s32.totalorder %s13, 0
      %p101 = por %p99, %p100
      %p102 = scmp.ne.s32.totalorder %s91, %s94
      %p103 = scmp.eq.s32.totalorder %s18, 3
      %p104 = por %p102, %p103
      %p105 = scmp.ne.s32.totalorder %s94, %s95
      %p106 = scmp.eq.s32.totalorder %s18, 0
      %p107 = por %p105, %p106
      %p108 = scmp.ne.s32.totalorder %s94, %s95
      %p109 = scmp.eq.s32.totalorder %s19, 3
      %p110 = por %p108, %p109
      %p112 = scmp.ne.s32.totalorder %s95, %s111
      %p113 = scmp.eq.s32.totalorder %s19, 0
      %p114 = por %p112, %p113
      %s115 = ssub.s32 %s20, %s32
      %p116 = scmp.eq.s32.totalorder %s115, 0
      %s118 = sadd.s32 %s117, 1
      %s119 = scalar_select %p116, %s117, %s118
      %p122 = pneg %p116
      %p123 = scmp.eq.s32.totalorder %s13, 3
      %p124 = por %p122, %p123
      %p125 = scmp.ne.s32.totalorder %s117, %s120
      %p126 = scmp.eq.s32.totalorder %s13, 0
      %p127 = por %p125, %p126
      %p128 = scmp.ne.s32.totalorder %s117, %s120
      %p129 = scmp.eq.s32.totalorder %s18, 3
      %p130 = por %p128, %p129
      %p131 = scmp.ne.s32.totalorder %s120, %s121
      %p132 = scmp.eq.s32.totalorder %s18, 0
      %p133 = por %p131, %p132
      %p134 = scmp.ne.s32.totalorder %s120, %s121
      %p135 = scmp.eq.s32.totalorder %s19, 3
      %p136 = por %p134, %p135
      %p138 = scmp.ne.s32.totalorder %s121, %s137
      %p139 = scmp.eq.s32.totalorder %s19, 0
      %p140 = por %p138, %p139
      %s141 = ssub.s32 %s20, %s32
      %s142 = ssub.s32 %s21, %s28
      %s143 = sor.u32 %s141, %s142
      %p144 = scmp.eq.s32.totalorder %s143, 0
      %s146 = sadd.s32 %s145, 1
      %s147 = scalar_select %p144, %s145, %s146
      %p150 = pneg %p144
      %p151 = scmp.eq.s32.totalorder %s13, 3
      %p152 = por %p150, %p151
      %p153 = scmp.ne.s32.totalorder %s145, %s148
      %p154 = scmp.eq.s32.totalorder %s13, 0
      %p155 = por %p153, %p154
      %p156 = scmp.ne.s32.totalorder %s145, %s148
      %p157 = scmp.eq.s32.totalorder %s18, 3
      %p158 = por %p156, %p157
      %p159 = scmp.ne.s32.totalorder %s148, %s149
      %p160 = scmp.eq.s32.totalorder %s18, 0
      %p161 = por %p159, %p160
      %p162 = scmp.ne.s32.totalorder %s148, %s149
      %p163 = scmp.eq.s32.totalorder %s19, 3
      %p164 = por %p162, %p163
      %p166 = scmp.ne.s32.totalorder %s149, %s165
      %p167 = scmp.eq.s32.totalorder %s19, 0
      %p168 = por %p166, %p167
      %p169 = scmp.le.s32.totalorder 1, %s13
      %p170 = scmp.lt.s32.totalorder %s13, 5
      %p171 = pnand %p169, %p170
      %p172 = pneg %p171
      // Predicated region
      $region9: #{tpu_custom_call.1} parent=5 // pred_check
        _
      $region10: #{tpu_custom_call.1} parent=5 // pred_check_branch
        %174 = sbr.rel (%p171) target = $region12
      $region11: #{tpu_custom_call.1} parent=5 // pred_region
        %s175 = ssub.s32 %s13, 1
      $region12: #{tpu_custom_call.1} parent=5 // pred_fallthru
        _
      %p176 = scmp.lt.s32.totalorder %s13, 4
      // Predicated region
      $region13: #{tpu_custom_call.1} parent=5 // pred_check
        %p177 = pneg %p176
      $region14: #{tpu_custom_call.1} parent=5 // pred_check_branch
        %179 = sbr.rel (%p177) target = $region16
      $region15: #{tpu_custom_call.1} parent=5 // pred_region
        // Predicated region
        $region17: #{tpu_custom_call.1} parent=15 // pred_check
          %p180 = pneg %p47
        $region18: #{tpu_custom_call.1} parent=15 // pred_check_branch
          %182 = sbr.rel (%p180) target = $region20
        $region19: #{tpu_custom_call.1} parent=15 // pred_region
          %s183 = smul.u32 8, %s21
          %p184 = scmp.lt.s32.totalorder %s20, 1
          %s185 = scalar_select %p184, %s20, 1
          %p186 = scmp.lt.s32.totalorder %s183, 15
          %s187 = scalar_select %p186, %s183, 15
          %s188 = smul.addr %s185, 16
          %s189 = sadd.s32 %s187, %s188
          %s190 = smul.addr %s189, 8
          %s191 = scalar_lea.vmem %s0, %s190
          %s192 = smul.u32 8, %s21
        $region20: #{tpu_custom_call.1} parent=15 // pred_fallthru
          _
        // Predicated region
        $region21: #{tpu_custom_call.1} parent=15 // pred_check
          %p193 = pneg %p73
        $region22: #{tpu_custom_call.1} parent=15 // pred_check_branch
          %195 = sbr.rel (%p193) target = $region24
        $region23: #{tpu_custom_call.1} parent=15 // pred_region
          %p196 = scmp.lt.s32.totalorder %s20, 1
          %s197 = scalar_select %p196, %s20, 1
          %s198 = smul.addr %s197, 4
          %s199 = scalar_lea.vmem %s1, %s198
        $region24: #{tpu_custom_call.1} parent=15 // pred_fallthru
          _
        // Predicated region
        $region25: #{tpu_custom_call.1} parent=15 // pred_check
          %p200 = pneg %p101
        $region26: #{tpu_custom_call.1} parent=15 // pred_check_branch
          %202 = sbr.rel (%p200) target = $region28
        $region27: #{tpu_custom_call.1} parent=15 // pred_region
          %s203 = smul.u32 8, %s21
          %p204 = scmp.lt.s32.totalorder %s20, 1
          %s205 = scalar_select %p204, %s20, 1
          %p206 = scmp.lt.s32.totalorder %s203, 15
          %s207 = scalar_select %p206, %s203, 15
          %s208 = smul.addr %s205, 16
          %s209 = sadd.s32 %s207, %s208
          %s210 = smul.addr %s209, 8
          %s211 = scalar_lea.vmem %s2, %s210
          %s212 = smul.u32 8, %s21
        $region28: #{tpu_custom_call.1} parent=15 // pred_fallthru
          _
        // Predicated region
        $region29: #{tpu_custom_call.1} parent=15 // pred_check
          %p213 = pneg %p127
        $region30: #{tpu_custom_call.1} parent=15 // pred_check_branch
          %215 = sbr.rel (%p213) target = $region32
        $region31: #{tpu_custom_call.1} parent=15 // pred_region
          %p216 = scmp.lt.s32.totalorder %s20, 1
          %s217 = scalar_select %p216, %s20, 1
          %s218 = scalar_lea.vmem %s3, %s217
        $region32: #{tpu_custom_call.1} parent=15 // pred_fallthru
          _
      $region16: #{tpu_custom_call.1} parent=5 // pred_fallthru
        _
      %p219 = scmp.le.s32.totalorder 1, %s13
      %p220 = scmp.lt.s32.totalorder %s13, 5
      %p221 = pnand %p219, %p220
      %p222 = pneg %p221
      // Predicated region
      $region33: #{tpu_custom_call.1} parent=5 // pred_check
        _
      $region34: #{tpu_custom_call.1} parent=5 // pred_check_branch
        %224 = sbr.rel (%p221) target = $region36
      $region35: #{tpu_custom_call.1} parent=5 // pred_region
        %s225 = ssub.s32 %s13, 1
        %s226 = smul.u32 8, %s23
        %p227 = scmp.lt.s32.totalorder %s22, 1
        %s228 = scalar_select %p227, %s22, 1
        %p229 = scmp.lt.s32.totalorder %s226, 15
        %s230 = scalar_select %p229, %s226, 15
        %s231 = smul.addr %s228, 16
        %s232 = sadd.s32 %s230, %s231
        %s233 = smul.addr %s232, 8
        %s234 = scalar_lea.vmem %s0, %s233
        %p235 = pneg %p53
        %p236 = pneg %p50
        %p237 = scmp.lt.s32.totalorder %s22, 1
        %s238 = scalar_select %p237, %s22, 1
        %s239 = smul.addr %s238, 4
        %s240 = scalar_lea.vmem %s1, %s239
        %p241 = pneg %p79
        %p242 = pneg %p76
        %s243 = smul.u32 8, %s23
        %p244 = scmp.lt.s32.totalorder %s22, 1
        %s245 = scalar_select %p244, %s22, 1
        %p246 = scmp.lt.s32.totalorder %s243, 15
        %s247 = scalar_select %p246, %s243, 15
        %s248 = smul.addr %s245, 16
        %s249 = sadd.s32 %s247, %s248
        %s250 = smul.addr %s249, 8
        %s251 = scalar_lea.vmem %s2, %s250
        %p252 = pneg %p107
        %p253 = pneg %p104
        %p254 = scmp.lt.s32.totalorder %s22, 1
        %s255 = scalar_select %p254, %s22, 1
        %s256 = scalar_lea.vmem %s3, %s255
        %p257 = pneg %p133
        %p258 = pneg %p130
        %p259 = pneg %p161
        %p260 = pneg %p158
        %s261 = sand.u32 %s148, 1
        %s262 = scalar_lea.sflag [#allocation3], %s261
        %s263 = sand.u32 %s148, 1
        %s264 = smul.addr %s263, 64
        %s265 = scalar_lea.vmem [#allocation2], %s264
        %s266 = smul.u32 8, %s23
        %p267 = scmp.lt.s32.totalorder %s22, 1
        %s268 = scalar_select %p267, %s22, 1
        %p269 = scmp.lt.s32.totalorder %s266, 15
        %s270 = scalar_select %p269, %s266, 15
        %s271 = smul.addr %s268, 16
        %s272 = sadd.s32 %s270, %s271
        %s273 = smul.addr %s272, 8
        %s274 = scalar_lea.vmem %s0, %s273
        %s275 = smul.u32 8, %s23
        %p276 = scmp.lt.s32.totalorder %s22, 1
        %s277 = scalar_select %p276, %s22, 1
        %s278 = smul.addr %s277, 4
        %s279 = scalar_lea.vmem %s1, %s278
        %s280 = smul.u32 8, %s23
        %p281 = scmp.lt.s32.totalorder %s22, 1
        %s282 = scalar_select %p281, %s22, 1
        %p283 = scmp.lt.s32.totalorder %s280, 15
        %s284 = scalar_select %p283, %s280, 15
        %s285 = smul.addr %s282, 16
        %s286 = sadd.s32 %s284, %s285
        %s287 = smul.addr %s286, 8
        %s288 = scalar_lea.vmem %s2, %s287
        %s289 = smul.u32 8, %s23
        %p290 = scmp.lt.s32.totalorder %s22, 1
        %s291 = scalar_select %p290, %s22, 1
        %s292 = scalar_lea.vmem %s3, %s291
        %s293 = smul.u32 8, %s23
        %v294 = vld [vmem:[%s274] sm:$0xff]
        %v295 = vld [vmem:[%s274 + $0x8] sm:$0xff]
        %v296 = vld [vmem:[%s274 + $0x10] sm:$0xff]
        %v297 = vld [vmem:[%s274 + $0x18] sm:$0xff]
        %v298 = vld [vmem:[%s274 + $0x20] sm:$0xff]
        %v299 = vld [vmem:[%s274 + $0x28] sm:$0xff]
        %v300 = vld [vmem:[%s274 + $0x30] sm:$0xff]
        %v301 = vld [vmem:[%s274 + $0x38] sm:$0xff]
        %v302 = vld [vmem:[%s279] sm:$0x7]
        %vm303 = vcmask 23552
        %v305 = vsel %vm303, %v294, 0
        %v308 = vsel %vm303, %v295, 0
        %v311 = vsel %vm303, %v296, 0
        %v314 = vsel %vm303, %v297, 0
        %v317 = vsel %vm303, %v298, 0
        %v320 = vsel %vm303, %v299, 0
        %v323 = vsel %vm303, %v300, 0
        %v326 = vsel %vm303, %v301, 0
        %vm328 = vcmask 1042432
        %v330 = vsel %vm328, %v302, 0
        %332 = vmatprep.subr.mxu0 0.0
        %v333 = vand.u32 %v330, 4294901760
        %334 = vmatpush1.msra.mxu0 %v333
        %335 = vmatprep.subr.mxu0 0.0
        %336 = vmatpush1.msra.mxu0 0.0
        %337 = vmatprep.subr.mxu0 0.0
        %338 = vmatpush1.msra.mxu0 0.0
        %339 = vmatprep.subr.mxu0 0.0
        %340 = vmatpush1.msra.mxu0 0.0
        %341 = vmatprep.subr.mxu0 0.0
        %342 = vmatpush1.msra.mxu0 0.0
        %343 = vmatprep.subr.mxu0 0.0
        %344 = vmatpush1.msra.mxu0 0.0
        %345 = vmatprep.subr.mxu0 0.0
        %346 = vmatpush1.msra.mxu0 0.0
        %347 = vmatprep.subr.mxu0 0.0
        %348 = vmatpush1.msra.mxu0 0.0
        %349 = vmatprep.subr.mxu0 0.0
        %350 = vmatpush1.msra.mxu0 0.0
        %351 = vmatprep.subr.mxu0 0.0
        %352 = vmatpush1.msra.mxu0 0.0
        %353 = vmatprep.subr.mxu0 0.0
        %354 = vmatpush1.msra.mxu0 0.0
        %355 = vmatprep.subr.mxu0 0.0
        %356 = vmatpush1.msra.mxu0 0.0
        %357 = vmatprep.subr.mxu0 0.0
        %358 = vmatpush1.msra.mxu0 0.0
        %359 = vmatprep.subr.mxu0 0.0
        %360 = vmatpush1.msra.mxu0 0.0
        %361 = vmatprep.subr.mxu0 0.0
        %362 = vmatpush1.msra.mxu0 0.0
        %363 = vmatprep.subr.mxu0 0.0
        %364 = vmatpush1.msra.mxu0 0.0
        %365 = vmatprep.subr.mxu0 0.0
        %366 = vmatpush1.msra.mxu0 0.0
        %367 = vmatprep.subr.mxu0 0.0
        %368 = vmatpush1.msra.mxu0 0.0
        %369 = vmatprep.subr.mxu0 0.0
        %370 = vmatpush1.msra.mxu0 0.0
        %371 = vmatprep.subr.mxu0 0.0
        %372 = vmatpush1.msra.mxu0 0.0
        %373 = vmatprep.subr.mxu0 0.0
        %374 = vmatpush1.msra.mxu0 0.0
        %375 = vmatprep.subr.mxu0 0.0
        %376 = vmatpush1.msra.mxu0 0.0
        %377 = vmatprep.subr.mxu0 0.0
        %378 = vmatpush1.msra.mxu0 0.0
        %379 = vmatprep.subr.mxu0 0.0
        %380 = vmatpush1.msra.mxu0 0.0
        %381 = vmatprep.subr.mxu0 0.0
        %382 = vmatpush1.msra.mxu0 0.0
        %383 = vmatprep.subr.mxu0 0.0
        %384 = vmatpush1.msra.mxu0 0.0
        %385 = vmatprep.subr.mxu0 0.0
        %386 = vmatpush1.msra.mxu0 0.0
        %387 = vmatprep.subr.mxu0 0.0
        %388 = vmatpush1.msra.mxu0 0.0
        %389 = vmatprep.subr.mxu0 0.0
        %390 = vmatpush1.msra.mxu0 0.0
        %391 = vmatprep.subr.mxu0 0.0
        %392 = vmatpush1.msra.mxu0 0.0
        %393 = vmatprep.subr.mxu0 0.0
        %394 = vmatpush1.msra.mxu0 0.0
        %395 = vmatprep.subr.mxu0 0.0
        %396 = vmatpush1.msra.mxu0 0.0
        %397 = vmatprep.mubr.f32.mxu0 0.0
        %v398 = vand.u32 %v305, 4294901760
        %v399 = vsub.f32 %v305, %v398
        %v400 = vand.u32 %v399, 4294901760
        %v401 = vsub.f32 %v399, %v400
        %v402 = vand.u32 %v401, 4294901760
        %403 = vmatmul.mubr.f32.gmra.mrb[0].mxu0 %v402
        %v404 = vpop.f32.mrb[0].mxu0
        %v405 = vadd.f32 0.0, %v404
        %v406 = vpop.f32.mrb[0].mxu0
        %407 = vmatprep.mubr.f32.mxu0 0.0
        %v408 = vand.u32 %v308, 4294901760
        %v409 = vsub.f32 %v308, %v408
        %v410 = vand.u32 %v409, 4294901760
        %v411 = vsub.f32 %v409, %v410
        %v412 = vand.u32 %v411, 4294901760
        %413 = vmatmul.mubr.f32.gmra.mrb[0].mxu0 %v412
        %v414 = vpop.f32.mrb[0].mxu0
        %v415 = vadd.f32 0.0, %v414
        %v416 = vpop.f32.mrb[0].mxu0
        %417 = vmatprep.mubr.f32.mxu0 0.0
        %v418 = vand.u32 %v311, 4294901760
        %v419 = vsub.f32 %v311, %v418
        %v420 = vand.u32 %v419, 4294901760
        %v421 = vsub.f32 %v419, %v420
        %v422 = vand.u32 %v421, 4294901760
        %423 = vmatmul.mubr.f32.gmra.mrb[0].mxu0 %v422
        %v424 = vpop.f32.mrb[0].mxu0
        %v425 = vadd.f32 0.0, %v424
        %v426 = vpop.f32.mrb[0].mxu0
        %427 = vmatprep.mubr.f32.mxu0 0.0
        %v428 = vand.u32 %v314, 4294901760
        %v429 = vsub.f32 %v314, %v428
        %v430 = vand.u32 %v429, 4294901760
        %v431 = vsub.f32 %v429, %v430
        %v432 = vand.u32 %v431, 4294901760
        %433 = vmatmul.mubr.f32.gmra.mrb[0].mxu0 %v432
        %v434 = vpop.f32.mrb[0].mxu0
        %v435 = vadd.f32 0.0, %v434
        %v436 = vpop.f32.mrb[0].mxu0
        %437 = vmatprep.mubr.f32.mxu0 0.0
        %v438 = vand.u32 %v317, 4294901760
        %v439 = vsub.f32 %v317, %v438
        %v440 = vand.u32 %v439, 4294901760
        %v441 = vsub.f32 %v439, %v440
        %v442 = vand.u32 %v441, 4294901760
        %443 = vmatmul.mubr.f32.gmra.mrb[0].mxu0 %v442
        %v444 = vpop.f32.mrb[0].mxu0
        %v445 = vadd.f32 0.0, %v444
        %v446 = vpop.f32.mrb[0].mxu0
        %447 = vmatprep.mubr.f32.mxu0 0.0
        %v448 = vand.u32 %v320, 4294901760
        %v449 = vsub.f32 %v320, %v448
        %v450 = vand.u32 %v449, 4294901760
        %v451 = vsub.f32 %v449, %v450
        %v452 = vand.u32 %v451, 4294901760
        %453 = vmatmul.mubr.f32.gmra.mrb[0].mxu0 %v452
        %v454 = vpop.f32.mrb[0].mxu0
        %v455 = vadd.f32 0.0, %v454
        %v456 = vpop.f32.mrb[0].mxu0
        %457 = vmatprep.mubr.f32.mxu0 0.0
        %v458 = vand.u32 %v323, 4294901760
        %v459 = vsub.f32 %v323, %v458
        %v460 = vand.u32 %v459, 4294901760
        %v461 = vsub.f32 %v459, %v460
        %v462 = vand.u32 %v461, 4294901760
        %463 = vmatmul.mubr.f32.gmra.mrb[0].mxu0 %v462
        %v464 = vpop.f32.mrb[0].mxu0
        %v465 = vadd.f32 0.0, %v464
        %v466 = vpop.f32.mrb[0].mxu0
        %467 = vmatprep.mubr.f32.mxu0 0.0
        %v468 = vand.u32 %v326, 4294901760
        %v469 = vsub.f32 %v326, %v468
        %v470 = vand.u32 %v469, 4294901760
        %v471 = vsub.f32 %v469, %v470
        %v472 = vand.u32 %v471, 4294901760
        %473 = vmatmul.mubr.f32.gmra.mrb[0].mxu0 %v472
        %v474 = vpop.f32.mrb[0].mxu0
        %v475 = vadd.f32 0.0, %v474
        %v476 = vpop.f32.mrb[0].mxu0
        %477 = vdwg.mxu0
        %478 = vmatprep.subr.mxu0 0.0
        %v479 = vand.u32 %v330, 4294901760
        %v480 = vsub.f32 %v330, %v479
        %v481 = vand.u32 %v480, 4294901760
        %v482 = vsub.f32 %v480, %v481
        %v483 = vand.u32 %v482, 4294901760
        %484 = vmatpush1.msra.mxu0 %v483
        %485 = vmatprep.subr.mxu0 0.0
        %486 = vmatpush1.msra.mxu0 0.0
        %487 = vmatprep.subr.mxu0 0.0
        %488 = vmatpush1.msra.mxu0 0.0
        %489 = vmatprep.subr.mxu0 0.0
        %490 = vmatpush1.msra.mxu0 0.0
        %491 = vmatprep.subr.mxu0 0.0
        %492 = vmatpush1.msra.mxu0 0.0
        %493 = vmatprep.subr.mxu0 0.0
        %494 = vmatpush1.msra.mxu0 0.0
        %495 = vmatprep.subr.mxu0 0.0
        %496 = vmatpush1.msra.mxu0 0.0
        %497 = vmatprep.subr.mxu0 0.0
        %498 = vmatpush1.msra.mxu0 0.0
        %499 = vmatprep.subr.mxu0 0.0
        %500 = vmatpush1.msra.mxu0 0.0
        %501 = vmatprep.subr.mxu0 0.0
        %502 = vmatpush1.msra.mxu0 0.0
        %503 = vmatprep.subr.mxu0 0.0
        %504 = vmatpush1.msra.mxu0 0.0
        %505 = vmatprep.subr.mxu0 0.0
        %506 = vmatpush1.msra.mxu0 0.0
        %507 = vmatprep.subr.mxu0 0.0
        %508 = vmatpush1.msra.mxu0 0.0
        %509 = vmatprep.subr.mxu0 0.0
        %510 = vmatpush1.msra.mxu0 0.0
        %511 = vmatprep.subr.mxu0 0.0
        %512 = vmatpush1.msra.mxu0 0.0
        %513 = vmatprep.subr.mxu0 0.0
        %514 = vmatpush1.msra.mxu0 0.0
        %515 = vmatprep.subr.mxu0 0.0
        %516 = vmatpush1.msra.mxu0 0.0
        %517 = vmatprep.subr.mxu0 0.0
        %518 = vmatpush1.msra.mxu0 0.0
        %519 = vmatprep.subr.mxu0 0.0
        %520 = vmatpush1.msra.mxu0 0.0
        %521 = vmatprep.subr.mxu0 0.0
        %522 = vmatpush1.msra.mxu0 0.0
        %523 = vmatprep.subr.mxu0 0.0
        %524 = vmatpush1.msra.mxu0 0.0
        %525 = vmatprep.subr.mxu0 0.0
        %526 = vmatpush1.msra.mxu0 0.0
        %527 = vmatprep.subr.mxu0 0.0
        %528 = vmatpush1.msra.mxu0 0.0
        %529 = vmatprep.subr.mxu0 0.0
        %530 = vmatpush1.msra.mxu0 0.0
        %531 = vmatprep.subr.mxu0 0.0
        %532 = vmatpush1.msra.mxu0 0.0
        %533 = vmatprep.subr.mxu0 0.0
        %534 = vmatpush1.msra.mxu0 0.0
        %535 = vmatprep.subr.mxu0 0.0
        %536 = vmatpush1.msra.mxu0 0.0
        %537 = vmatprep.subr.mxu0 0.0
        %538 = vmatpush1.msra.mxu0 0.0
        %539 = vmatprep.subr.mxu0 0.0
        %540 = vmatpush1.msra.mxu0 0.0
        %541 = vmatprep.subr.mxu0 0.0
        %542 = vmatpush1.msra.mxu0 0.0
        %543 = vmatprep.subr.mxu0 0.0
        %544 = vmatpush1.msra.mxu0 0.0
        %545 = vmatprep.subr.mxu0 0.0
        %546 = vmatpush1.msra.mxu0 0.0
        %547 = vmatprep.mubr.f32.mxu0 0.0
        %v548 = vand.u32 %v305, 4294901760
        %549 = vmatmul.mubr.f32.gmra.mrb[0].mxu0 %v548
        %v550 = vpop.f32.mrb[0].mxu0
        %v551 = vadd.f32 %v405, %v550
        %v552 = vpop.f32.mrb[0].mxu0
        %553 = vmatprep.mubr.f32.mxu0 0.0
        %v554 = vand.u32 %v308, 4294901760
        %555 = vmatmul.mubr.f32.gmra.mrb[0].mxu0 %v554
        %v556 = vpop.f32.mrb[0].mxu0
        %v557 = vadd.f32 %v415, %v556
        %v558 = vpop.f32.mrb[0].mxu0
        %559 = vmatprep.mubr.f32.mxu0 0.0
        %v560 = vand.u32 %v311, 4294901760
        %561 = vmatmul.mubr.f32.gmra.mrb[0].mxu0 %v560
        %v562 = vpop.f32.mrb[0].mxu0
        %v563 = vadd.f32 %v425, %v562
        %v564 = vpop.f32.mrb[0].mxu0
        %565 = vmatprep.mubr.f32.mxu0 0.0
        %v566 = vand.u32 %v314, 4294901760
        %567 = vmatmul.mubr.f32.gmra.mrb[0].mxu0 %v566
        %v568 = vpop.f32.mrb[0].mxu0
        %v569 = vadd.f32 %v435, %v568
        %v570 = vpop.f32.mrb[0].mxu0
        %571 = vmatprep.mubr.f32.mxu0 0.0
        %v572 = vand.u32 %v317, 4294901760
        %573 = vmatmul.mubr.f32.gmra.mrb[0].mxu0 %v572
        %v574 = vpop.f32.mrb[0].mxu0
        %v575 = vadd.f32 %v445, %v574
        %v576 = vpop.f32.mrb[0].mxu0
        %577 = vmatprep.mubr.f32.mxu0 0.0
        %v578 = vand.u32 %v320, 4294901760
        %579 = vmatmul.mubr.f32.gmra.mrb[0].mxu0 %v578
        %v580 = vpop.f32.mrb[0].mxu0
        %v581 = vadd.f32 %v455, %v580
        %v582 = vpop.f32.mrb[0].mxu0
        %583 = vmatprep.mubr.f32.mxu0 0.0
        %v584 = vand.u32 %v323, 4294901760
        %585 = vmatmul.mubr.f32.gmra.mrb[0].mxu0 %v584
        %v586 = vpop.f32.mrb[0].mxu0
        %v587 = vadd.f32 %v465, %v586
        %v588 = vpop.f32.mrb[0].mxu0
        %589 = vmatprep.mubr.f32.mxu0 0.0
        %v590 = vand.u32 %v326, 4294901760
        %591 = vmatmul.mubr.f32.gmra.mrb[0].mxu0 %v590
        %v592 = vpop.f32.mrb[0].mxu0
        %v593 = vadd.f32 %v475, %v592
        %v594 = vpop.f32.mrb[0].mxu0
        %595 = vdwg.mxu0
        %596 = vmatprep.subr.mxu0 0.0
        %v597 = vand.u32 %v330, 4294901760
        %v598 = vsub.f32 %v330, %v597
        %599 = vmatpush1.msra.mxu0 %v598
        %600 = vmatprep.subr.mxu0 0.0
        %601 = vmatpush1.msra.mxu0 0.0
        %602 = vmatprep.subr.mxu0 0.0
        %603 = vmatpush1.msra.mxu0 0.0
        %604 = vmatprep.subr.mxu0 0.0
        %605 = vmatpush1.msra.mxu0 0.0
        %606 = vmatprep.subr.mxu0 0.0
        %607 = vmatpush1.msra.mxu0 0.0
        %608 = vmatprep.subr.mxu0 0.0
        %609 = vmatpush1.msra.mxu0 0.0
        %610 = vmatprep.subr.mxu0 0.0
        %611 = vmatpush1.msra.mxu0 0.0
        %612 = vmatprep.subr.mxu0 0.0
        %613 = vmatpush1.msra.mxu0 0.0
        %614 = vmatprep.subr.mxu0 0.0
        %615 = vmatpush1.msra.mxu0 0.0
        %616 = vmatprep.subr.mxu0 0.0
        %617 = vmatpush1.msra.mxu0 0.0
        %618 = vmatprep.subr.mxu0 0.0
        %619 = vmatpush1.msra.mxu0 0.0
        %620 = vmatprep.subr.mxu0 0.0
        %621 = vmatpush1.msra.mxu0 0.0
        %622 = vmatprep.subr.mxu0 0.0
        %623 = vmatpush1.msra.mxu0 0.0
        %624 = vmatprep.subr.mxu0 0.0
        %625 = vmatpush1.msra.mxu0 0.0
        %626 = vmatprep.subr.mxu0 0.0
        %627 = vmatpush1.msra.mxu0 0.0
        %628 = vmatprep.subr.mxu0 0.0
        %629 = vmatpush1.msra.mxu0 0.0
        %630 = vmatprep.subr.mxu0 0.0
        %631 = vmatpush1.msra.mxu0 0.0
        %632 = vmatprep.subr.mxu0 0.0
        %633 = vmatpush1.msra.mxu0 0.0
        %634 = vmatprep.subr.mxu0 0.0
        %635 = vmatpush1.msra.mxu0 0.0
        %636 = vmatprep.subr.mxu0 0.0
        %637 = vmatpush1.msra.mxu0 0.0
        %638 = vmatprep.subr.mxu0 0.0
        %639 = vmatpush1.msra.mxu0 0.0
        %640 = vmatprep.subr.mxu0 0.0
        %641 = vmatpush1.msra.mxu0 0.0
        %642 = vmatprep.subr.mxu0 0.0
        %643 = vmatpush1.msra.mxu0 0.0
        %644 = vmatprep.subr.mxu0 0.0
        %645 = vmatpush1.msra.mxu0 0.0
        %646 = vmatprep.subr.mxu0 0.0
        %647 = vmatpush1.msra.mxu0 0.0
        %648 = vmatprep.subr.mxu0 0.0
        %649 = vmatpush1.msra.mxu0 0.0
        %650 = vmatprep.subr.mxu0 0.0
        %651 = vmatpush1.msra.mxu0 0.0
        %652 = vmatprep.subr.mxu0 0.0
        %653 = vmatpush1.msra.mxu0 0.0
        %654 = vmatprep.subr.mxu0 0.0
        %655 = vmatpush1.msra.mxu0 0.0
        %656 = vmatprep.subr.mxu0 0.0
        %657 = vmatpush1.msra.mxu0 0.0
        %658 = vmatprep.subr.mxu0 0.0
        %659 = vmatpush1.msra.mxu0 0.0
        %660 = vmatprep.subr.mxu0 0.0
        %661 = vmatpush1.msra.mxu0 0.0
        %662 = vmatprep.mubr.f32.mxu0 0.0
        %v663 = vand.u32 %v305, 4294901760
        %v664 = vsub.f32 %v305, %v663
        %665 = vmatmul.mubr.f32.gmra.mrb[0].mxu0 %v664
        %v666 = vpop.f32.mrb[0].mxu0
        %v667 = vadd.f32 %v551, %v666
        %v668 = vpop.f32.mrb[0].mxu0
        %669 = vmatprep.mubr.f32.mxu0 0.0
        %v670 = vand.u32 %v308, 4294901760
        %v671 = vsub.f32 %v308, %v670
        %672 = vmatmul.mubr.f32.gmra.mrb[0].mxu0 %v671
        %v673 = vpop.f32.mrb[0].mxu0
        %v674 = vadd.f32 %v557, %v673
        %v675 = vpop.f32.mrb[0].mxu0
        %676 = vmatprep.mubr.f32.mxu0 0.0
        %v677 = vand.u32 %v311, 4294901760
        %v678 = vsub.f32 %v311, %v677
        %679 = vmatmul.mubr.f32.gmra.mrb[0].mxu0 %v678
        %v680 = vpop.f32.mrb[0].mxu0
        %v681 = vadd.f32 %v563, %v680
        %v682 = vpop.f32.mrb[0].mxu0
        %683 = vmatprep.mubr.f32.mxu0 0.0
        %v684 = vand.u32 %v314, 4294901760
        %v685 = vsub.f32 %v314, %v684
        %686 = vmatmul.mubr.f32.gmra.mrb[0].mxu0 %v685
        %v687 = vpop.f32.mrb[0].mxu0
        %v688 = vadd.f32 %v569, %v687
        %v689 = vpop.f32.mrb[0].mxu0
        %690 = vmatprep.mubr.f32.mxu0 0.0
        %v691 = vand.u32 %v317, 4294901760
        %v692 = vsub.f32 %v317, %v691
        %693 = vmatmul.mubr.f32.gmra.mrb[0].mxu0 %v692
        %v694 = vpop.f32.mrb[0].mxu0
        %v695 = vadd.f32 %v575, %v694
        %v696 = vpop.f32.mrb[0].mxu0
        %697 = vmatprep.mubr.f32.mxu0 0.0
        %v698 = vand.u32 %v320, 4294901760
        %v699 = vsub.f32 %v320, %v698
        %700 = vmatmul.mubr.f32.gmra.mrb[0].mxu0 %v699
        %v701 = vpop.f32.mrb[0].mxu0
        %v702 = vadd.f32 %v581, %v701
        %v703 = vpop.f32.mrb[0].mxu0
        %704 = vmatprep.mubr.f32.mxu0 0.0
        %v705 = vand.u32 %v323, 4294901760
        %v706 = vsub.f32 %v323, %v705
        %707 = vmatmul.mubr.f32.gmra.mrb[0].mxu0 %v706
        %v708 = vpop.f32.mrb[0].mxu0
        %v709 = vadd.f32 %v587, %v708
        %v710 = vpop.f32.mrb[0].mxu0
        %711 = vmatprep.mubr.f32.mxu0 0.0
        %v712 = vand.u32 %v326, 4294901760
        %v713 = vsub.f32 %v326, %v712
        %714 = vmatmul.mubr.f32.gmra.mrb[0].mxu0 %v713
        %v715 = vpop.f32.mrb[0].mxu0
        %v716 = vadd.f32 %v593, %v715
        %v717 = vpop.f32.mrb[0].mxu0
        %718 = vdwg.mxu0
        %719 = vmatprep.subr.mxu0 0.0
        %v720 = vand.u32 %v330, 4294901760
        %721 = vmatpush1.msra.mxu0 %v720
        %722 = vmatprep.subr.mxu0 0.0
        %723 = vmatpush1.msra.mxu0 0.0
        %724 = vmatprep.subr.mxu0 0.0
        %725 = vmatpush1.msra.mxu0 0.0
        %726 = vmatprep.subr.mxu0 0.0
        %727 = vmatpush1.msra.mxu0 0.0
        %728 = vmatprep.subr.mxu0 0.0
        %729 = vmatpush1.msra.mxu0 0.0
        %730 = vmatprep.subr.mxu0 0.0
        %731 = vmatpush1.msra.mxu0 0.0
        %732 = vmatprep.subr.mxu0 0.0
        %733 = vmatpush1.msra.mxu0 0.0
        %734 = vmatprep.subr.mxu0 0.0
        %735 = vmatpush1.msra.mxu0 0.0
        %736 = vmatprep.subr.mxu0 0.0
        %737 = vmatpush1.msra.mxu0 0.0
        %738 = vmatprep.subr.mxu0 0.0
        %739 = vmatpush1.msra.mxu0 0.0
        %740 = vmatprep.subr.mxu0 0.0
        %741 = vmatpush1.msra.mxu0 0.0
        %742 = vmatprep.subr.mxu0 0.0
        %743 = vmatpush1.msra.mxu0 0.0
        %744 = vmatprep.subr.mxu0 0.0
        %745 = vmatpush1.msra.mxu0 0.0
        %746 = vmatprep.subr.mxu0 0.0
        %747 = vmatpush1.msra.mxu0 0.0
        %748 = vmatprep.subr.mxu0 0.0
        %749 = vmatpush1.msra.mxu0 0.0
        %750 = vmatprep.subr.mxu0 0.0
        %751 = vmatpush1.msra.mxu0 0.0
        %752 = vmatprep.subr.mxu0 0.0
        %753 = vmatpush1.msra.mxu0 0.0
        %754 = vmatprep.subr.mxu0 0.0
        %755 = vmatpush1.msra.mxu0 0.0
        %756 = vmatprep.subr.mxu0 0.0
        %757 = vmatpush1.msra.mxu0 0.0
        %758 = vmatprep.subr.mxu0 0.0
        %759 = vmatpush1.msra.mxu0 0.0
        %760 = vmatprep.subr.mxu0 0.0
        %761 = vmatpush1.msra.mxu0 0.0
        %762 = vmatprep.subr.mxu0 0.0
        %763 = vmatpush1.msra.mxu0 0.0
        %764 = vmatprep.subr.mxu0 0.0
        %765 = vmatpush1.msra.mxu0 0.0
        %766 = vmatprep.subr.mxu0 0.0
        %767 = vmatpush1.msra.mxu0 0.0
        %768 = vmatprep.subr.mxu0 0.0
        %769 = vmatpush1.msra.mxu0 0.0
        %770 = vmatprep.subr.mxu0 0.0
        %771 = vmatpush1.msra.mxu0 0.0
        %772 = vmatprep.subr.mxu0 0.0
        %773 = vmatpush1.msra.mxu0 0.0
        %774 = vmatprep.subr.mxu0 0.0
        %775 = vmatpush1.msra.mxu0 0.0
        %776 = vmatprep.subr.mxu0 0.0
        %777 = vmatpush1.msra.mxu0 0.0
        %778 = vmatprep.subr.mxu0 0.0
        %779 = vmatpush1.msra.mxu0 0.0
        %780 = vmatprep.subr.mxu0 0.0
        %781 = vmatpush1.msra.mxu0 0.0
        %782 = vmatprep.subr.mxu0 0.0
        %783 = vmatpush1.msra.mxu0 0.0
        %784 = vmatprep.mubr.f32.mxu0 0.0
        %v785 = vand.u32 %v305, 4294901760
        %v786 = vsub.f32 %v305, %v785
        %v787 = vand.u32 %v786, 4294901760
        %788 = vmatmul.mubr.f32.gmra.mrb[0].mxu0 %v787
        %v789 = vpop.f32.mrb[0].mxu0
        %v790 = vadd.f32 %v667, %v789
        %v791 = vpop.f32.mrb[0].mxu0
        %792 = vmatprep.mubr.f32.mxu0 0.0
        %v793 = vand.u32 %v308, 4294901760
        %v794 = vsub.f32 %v308, %v793
        %v795 = vand.u32 %v794, 4294901760
        %796 = vmatmul.mubr.f32.gmra.mrb[0].mxu0 %v795
        %v797 = vpop.f32.mrb[0].mxu0
        %v798 = vadd.f32 %v674, %v797
        %v799 = vpop.f32.mrb[0].mxu0
        %800 = vmatprep.mubr.f32.mxu0 0.0
        %v801 = vand.u32 %v311, 4294901760
        %v802 = vsub.f32 %v311, %v801
        %v803 = vand.u32 %v802, 4294901760
        %804 = vmatmul.mubr.f32.gmra.mrb[0].mxu0 %v803
        %v805 = vpop.f32.mrb[0].mxu0
        %v806 = vadd.f32 %v681, %v805
        %v807 = vpop.f32.mrb[0].mxu0
        %808 = vmatprep.mubr.f32.mxu0 0.0
        %v809 = vand.u32 %v314, 4294901760
        %v810 = vsub.f32 %v314, %v809
        %v811 = vand.u32 %v810, 4294901760
        %812 = vmatmul.mubr.f32.gmra.mrb[0].mxu0 %v811
        %v813 = vpop.f32.mrb[0].mxu0
        %v814 = vadd.f32 %v688, %v813
        %v815 = vpop.f32.mrb[0].mxu0
        %816 = vmatprep.mubr.f32.mxu0 0.0
        %v817 = vand.u32 %v317, 4294901760
        %v818 = vsub.f32 %v317, %v817
        %v819 = vand.u32 %v818, 4294901760
        %820 = vmatmul.mubr.f32.gmra.mrb[0].mxu0 %v819
        %v821 = vpop.f32.mrb[0].mxu0
        %v822 = vadd.f32 %v695, %v821
        %v823 = vpop.f32.mrb[0].mxu0
        %824 = vmatprep.mubr.f32.mxu0 0.0
        %v825 = vand.u32 %v320, 4294901760
        %v826 = vsub.f32 %v320, %v825
        %v827 = vand.u32 %v826, 4294901760
        %828 = vmatmul.mubr.f32.gmra.mrb[0].mxu0 %v827
        %v829 = vpop.f32.mrb[0].mxu0
        %v830 = vadd.f32 %v702, %v829
        %v831 = vpop.f32.mrb[0].mxu0
        %832 = vmatprep.mubr.f32.mxu0 0.0
        %v833 = vand.u32 %v323, 4294901760
        %v834 = vsub.f32 %v323, %v833
        %v835 = vand.u32 %v834, 4294901760
        %836 = vmatmul.mubr.f32.gmra.mrb[0].mxu0 %v835
        %v837 = vpop.f32.mrb[0].mxu0
        %v838 = vadd.f32 %v709, %v837
        %v839 = vpop.f32.mrb[0].mxu0
        %840 = vmatprep.mubr.f32.mxu0 0.0
        %v841 = vand.u32 %v326, 4294901760
        %v842 = vsub.f32 %v326, %v841
        %v843 = vand.u32 %v842, 4294901760
        %844 = vmatmul.mubr.f32.gmra.mrb[0].mxu0 %v843
        %v845 = vpop.f32.mrb[0].mxu0
        %v846 = vadd.f32 %v716, %v845
        %v847 = vpop.f32.mrb[0].mxu0
        %848 = vdwg.mxu0
        %849 = vmatprep.subr.mxu0 0.0
        %v850 = vand.u32 %v330, 4294901760
        %v851 = vsub.f32 %v330, %v850
        %v852 = vand.u32 %v851, 4294901760
        %853 = vmatpush1.msra.mxu0 %v852
        %854 = vmatprep.subr.mxu0 0.0
        %855 = vmatpush1.msra.mxu0 0.0
        %856 = vmatprep.subr.mxu0 0.0
        %857 = vmatpush1.msra.mxu0 0.0
        %858 = vmatprep.subr.mxu0 0.0
        %859 = vmatpush1.msra.mxu0 0.0
        %860 = vmatprep.subr.mxu0 0.0
        %861 = vmatpush1.msra.mxu0 0.0
        %862 = vmatprep.subr.mxu0 0.0
        %863 = vmatpush1.msra.mxu0 0.0
        %864 = vmatprep.subr.mxu0 0.0
        %865 = vmatpush1.msra.mxu0 0.0
        %866 = vmatprep.subr.mxu0 0.0
        %867 = vmatpush1.msra.mxu0 0.0
        %868 = vmatprep.subr.mxu0 0.0
        %869 = vmatpush1.msra.mxu0 0.0
        %870 = vmatprep.subr.mxu0 0.0
        %871 = vmatpush1.msra.mxu0 0.0
        %872 = vmatprep.subr.mxu0 0.0
        %873 = vmatpush1.msra.mxu0 0.0
        %874 = vmatprep.subr.mxu0 0.0
        %875 = vmatpush1.msra.mxu0 0.0
        %876 = vmatprep.subr.mxu0 0.0
        %877 = vmatpush1.msra.mxu0 0.0
        %878 = vmatprep.subr.mxu0 0.0
        %879 = vmatpush1.msra.mxu0 0.0
        %880 = vmatprep.subr.mxu0 0.0
        %881 = vmatpush1.msra.mxu0 0.0
        %882 = vmatprep.subr.mxu0 0.0
        %883 = vmatpush1.msra.mxu0 0.0
        %884 = vmatprep.subr.mxu0 0.0
        %885 = vmatpush1.msra.mxu0 0.0
        %886 = vmatprep.subr.mxu0 0.0
        %887 = vmatpush1.msra.mxu0 0.0
        %888 = vmatprep.subr.mxu0 0.0
        %889 = vmatpush1.msra.mxu0 0.0
        %890 = vmatprep.subr.mxu0 0.0
        %891 = vmatpush1.msra.mxu0 0.0
        %892 = vmatprep.subr.mxu0 0.0
        %893 = vmatpush1.msra.mxu0 0.0
        %894 = vmatprep.subr.mxu0 0.0
        %895 = vmatpush1.msra.mxu0 0.0
        %896 = vmatprep.subr.mxu0 0.0
        %897 = vmatpush1.msra.mxu0 0.0
        %898 = vmatprep.subr.mxu0 0.0
        %899 = vmatpush1.msra.mxu0 0.0
        %900 = vmatprep.subr.mxu0 0.0
        %901 = vmatpush1.msra.mxu0 0.0
        %902 = vmatprep.subr.mxu0 0.0
        %903 = vmatpush1.msra.mxu0 0.0
        %904 = vmatprep.subr.mxu0 0.0
        %905 = vmatpush1.msra.mxu0 0.0
        %906 = vmatprep.subr.mxu0 0.0
        %907 = vmatpush1.msra.mxu0 0.0
        %908 = vmatprep.subr.mxu0 0.0
        %909 = vmatpush1.msra.mxu0 0.0
        %910 = vmatprep.subr.mxu0 0.0
        %911 = vmatpush1.msra.mxu0 0.0
        %912 = vmatprep.subr.mxu0 0.0
        %913 = vmatpush1.msra.mxu0 0.0
        %914 = vmatprep.subr.mxu0 0.0
        %915 = vmatpush1.msra.mxu0 0.0
        %916 = vmatprep.mubr.f32.mxu0 0.0
        %v917 = vand.u32 %v305, 4294901760
        %918 = vmatmul.mubr.f32.gmra.mrb[0].mxu0 %v917
        %v919 = vpop.f32.mrb[0].mxu0
        %v920 = vadd.f32 %v790, %v919
        %v921 = vpop.f32.mrb[0].mxu0
        %922 = vmatprep.mubr.f32.mxu0 0.0
        %v923 = vand.u32 %v308, 4294901760
        %924 = vmatmul.mubr.f32.gmra.mrb[0].mxu0 %v923
        %v925 = vpop.f32.mrb[0].mxu0
        %v926 = vadd.f32 %v798, %v925
        %v927 = vpop.f32.mrb[0].mxu0
        %928 = vmatprep.mubr.f32.mxu0 0.0
        %v929 = vand.u32 %v311, 4294901760
        %930 = vmatmul.mubr.f32.gmra.mrb[0].mxu0 %v929
        %v931 = vpop.f32.mrb[0].mxu0
        %v932 = vadd.f32 %v806, %v931
        %v933 = vpop.f32.mrb[0].mxu0
        %934 = vmatprep.mubr.f32.mxu0 0.0
        %v935 = vand.u32 %v314, 4294901760
        %936 = vmatmul.mubr.f32.gmra.mrb[0].mxu0 %v935
        %v937 = vpop.f32.mrb[0].mxu0
        %v938 = vadd.f32 %v814, %v937
        %v939 = vpop.f32.mrb[0].mxu0
        %940 = vmatprep.mubr.f32.mxu0 0.0
        %v941 = vand.u32 %v317, 4294901760
        %942 = vmatmul.mubr.f32.gmra.mrb[0].mxu0 %v941
        %v943 = vpop.f32.mrb[0].mxu0
        %v944 = vadd.f32 %v822, %v943
        %v945 = vpop.f32.mrb[0].mxu0
        %946 = vmatprep.mubr.f32.mxu0 0.0
        %v947 = vand.u32 %v320, 4294901760
        %948 = vmatmul.mubr.f32.gmra.mrb[0].mxu0 %v947
        %v949 = vpop.f32.mrb[0].mxu0
        %v950 = vadd.f32 %v830, %v949
        %v951 = vpop.f32.mrb[0].mxu0
        %952 = vmatprep.mubr.f32.mxu0 0.0
        %v953 = vand.u32 %v323, 4294901760
        %954 = vmatmul.mubr.f32.gmra.mrb[0].mxu0 %v953
        %v955 = vpop.f32.mrb[0].mxu0
        %v956 = vadd.f32 %v838, %v955
        %v957 = vpop.f32.mrb[0].mxu0
        %958 = vmatprep.mubr.f32.mxu0 0.0
        %v959 = vand.u32 %v326, 4294901760
        %960 = vmatmul.mubr.f32.gmra.mrb[0].mxu0 %v959
        %v961 = vpop.f32.mrb[0].mxu0
        %v962 = vadd.f32 %v846, %v961
        %v963 = vpop.f32.mrb[0].mxu0
        %964 = vdwg.mxu0
        %965 = vmatprep.subr.mxu0 0.0
        %v966 = vand.u32 %v330, 4294901760
        %967 = vmatpush1.msra.mxu0 %v966
        %968 = vmatprep.subr.mxu0 0.0
        %969 = vmatpush1.msra.mxu0 0.0
        %970 = vmatprep.subr.mxu0 0.0
        %971 = vmatpush1.msra.mxu0 0.0
        %972 = vmatprep.subr.mxu0 0.0
        %973 = vmatpush1.msra.mxu0 0.0
        %974 = vmatprep.subr.mxu0 0.0
        %975 = vmatpush1.msra.mxu0 0.0
        %976 = vmatprep.subr.mxu0 0.0
        %977 = vmatpush1.msra.mxu0 0.0
        %978 = vmatprep.subr.mxu0 0.0
        %979 = vmatpush1.msra.mxu0 0.0
        %980 = vmatprep.subr.mxu0 0.0
        %981 = vmatpush1.msra.mxu0 0.0
        %982 = vmatprep.subr.mxu0 0.0
        %983 = vmatpush1.msra.mxu0 0.0
        %984 = vmatprep.subr.mxu0 0.0
        %985 = vmatpush1.msra.mxu0 0.0
        %986 = vmatprep.subr.mxu0 0.0
        %987 = vmatpush1.msra.mxu0 0.0
        %988 = vmatprep.subr.mxu0 0.0
        %989 = vmatpush1.msra.mxu0 0.0
        %990 = vmatprep.subr.mxu0 0.0
        %991 = vmatpush1.msra.mxu0 0.0
        %992 = vmatprep.subr.mxu0 0.0
        %993 = vmatpush1.msra.mxu0 0.0
        %994 = vmatprep.subr.mxu0 0.0
        %995 = vmatpush1.msra.mxu0 0.0
        %996 = vmatprep.subr.mxu0 0.0
        %997 = vmatpush1.msra.mxu0 0.0
        %998 = vmatprep.subr.mxu0 0.0
        %999 = vmatpush1.msra.mxu0 0.0
        %1000 = vmatprep.subr.mxu0 0.0
        %1001 = vmatpush1.msra.mxu0 0.0
        %1002 = vmatprep.subr.mxu0 0.0
        %1003 = vmatpush1.msra.mxu0 0.0
        %1004 = vmatprep.subr.mxu0 0.0
        %1005 = vmatpush1.msra.mxu0 0.0
        %1006 = vmatprep.subr.mxu0 0.0
        %1007 = vmatpush1.msra.mxu0 0.0
        %1008 = vmatprep.subr.mxu0 0.0
        %1009 = vmatpush1.msra.mxu0 0.0
        %1010 = vmatprep.subr.mxu0 0.0
        %1011 = vmatpush1.msra.mxu0 0.0
        %1012 = vmatprep.subr.mxu0 0.0
        %1013 = vmatpush1.msra.mxu0 0.0
        %1014 = vmatprep.subr.mxu0 0.0
        %1015 = vmatpush1.msra.mxu0 0.0
        %1016 = vmatprep.subr.mxu0 0.0
        %1017 = vmatpush1.msra.mxu0 0.0
        %1018 = vmatprep.subr.mxu0 0.0
        %1019 = vmatpush1.msra.mxu0 0.0
        %1020 = vmatprep.subr.mxu0 0.0
        %1021 = vmatpush1.msra.mxu0 0.0
        %1022 = vmatprep.subr.mxu0 0.0
        %1023 = vmatpush1.msra.mxu0 0.0
        %1024 = vmatprep.subr.mxu0 0.0
        %1025 = vmatpush1.msra.mxu0 0.0
        %1026 = vmatprep.subr.mxu0 0.0
        %1027 = vmatpush1.msra.mxu0 0.0
        %1028 = vmatprep.subr.mxu0 0.0
        %1029 = vmatpush1.msra.mxu0 0.0
        %1030 = vmatprep.mubr.f32.mxu0 0.0
        %v1031 = vand.u32 %v305, 4294901760
        %1032 = vmatmul.mubr.f32.gmra.mrb[0].mxu0 %v1031
        %v1033 = vpop.f32.mrb[0].mxu0
        %v1034 = vadd.f32 %v920, %v1033
        %v1035 = vpop.f32.mrb[0].mxu0
        %1036 = vmatprep.mubr.f32.mxu0 0.0
        %v1037 = vand.u32 %v308, 4294901760
        %1038 = vmatmul.mubr.f32.gmra.mrb[0].mxu0 %v1037
        %v1039 = vpop.f32.mrb[0].mxu0
        %v1040 = vadd.f32 %v926, %v1039
        %v1041 = vpop.f32.mrb[0].mxu0
        %1042 = vmatprep.mubr.f32.mxu0 0.0
        %v1043 = vand.u32 %v311, 4294901760
        %1044 = vmatmul.mubr.f32.gmra.mrb[0].mxu0 %v1043
        %v1045 = vpop.f32.mrb[0].mxu0
        %v1046 = vadd.f32 %v932, %v1045
        %v1047 = vpop.f32.mrb[0].mxu0
        %1048 = vmatprep.mubr.f32.mxu0 0.0
        %v1049 = vand.u32 %v314, 4294901760
        %1050 = vmatmul.mubr.f32.gmra.mrb[0].mxu0 %v1049
        %v1051 = vpop.f32.mrb[0].mxu0
        %v1052 = vadd.f32 %v938, %v1051
        %v1053 = vpop.f32.mrb[0].mxu0
        %1054 = vmatprep.mubr.f32.mxu0 0.0
        %v1055 = vand.u32 %v317, 4294901760
        %1056 = vmatmul.mubr.f32.gmra.mrb[0].mxu0 %v1055
        %v1057 = vpop.f32.mrb[0].mxu0
        %v1058 = vadd.f32 %v944, %v1057
        %v1059 = vpop.f32.mrb[0].mxu0
        %1060 = vmatprep.mubr.f32.mxu0 0.0
        %v1061 = vand.u32 %v320, 4294901760
        %1062 = vmatmul.mubr.f32.gmra.mrb[0].mxu0 %v1061
        %v1063 = vpop.f32.mrb[0].mxu0
        %v1064 = vadd.f32 %v950, %v1063
        %v1065 = vpop.f32.mrb[0].mxu0
        %1066 = vmatprep.mubr.f32.mxu0 0.0
        %v1067 = vand.u32 %v323, 4294901760
        %1068 = vmatmul.mubr.f32.gmra.mrb[0].mxu0 %v1067
        %v1069 = vpop.f32.mrb[0].mxu0
        %v1070 = vadd.f32 %v956, %v1069
        %v1071 = vpop.f32.mrb[0].mxu0
        %1072 = vmatprep.mubr.f32.mxu0 0.0
        %v1073 = vand.u32 %v326, 4294901760
        %1074 = vmatmul.mubr.f32.gmra.mrb[0].mxu0 %v1073
        %v1075 = vpop.f32.mrb[0].mxu0
        %v1076 = vadd.f32 %v962, %v1075
        %v1077 = vpop.f32.mrb[0].mxu0
        %1078 = vdwg.mxu0
        %v1079 = vmul.f32 %v1034, 2.0
        %v1080 = vmul.f32 %v1040, 2.0
        %v1081 = vmul.f32 %v1046, 2.0
        %v1082 = vmul.f32 %v1052, 2.0
        %v1083 = vmul.f32 %v1058, 2.0
        %v1084 = vmul.f32 %v1064, 2.0
        %v1085 = vmul.f32 %v1070, 2.0
        %v1086 = vmul.f32 %v1076, 2.0
        %v1087 = vld [vmem:[%s288] sm:$0xff]
        %v1088 = vld [vmem:[%s288 + $0x8] sm:$0xff]
        %v1089 = vld [vmem:[%s288 + $0x10] sm:$0xff]
        %v1090 = vld [vmem:[%s288 + $0x18] sm:$0xff]
        %v1091 = vld [vmem:[%s288 + $0x20] sm:$0xff]
        %v1092 = vld [vmem:[%s288 + $0x28] sm:$0xff]
        %v1093 = vld [vmem:[%s288 + $0x30] sm:$0xff]
        %v1094 = vld [vmem:[%s288 + $0x38] sm:$0xff]
        %1096 = vset.pattern.permute.xlu0 0
        %1097 = vperm.xlu0 %1096, %v1087
        %v1098 = vpop.permute.xlu0 %1097
        %1101 = vset.pattern.permute.xlu0 0
        %1102 = vperm.xlu0 %1101, %v1088
        %v1103 = vpop.permute.xlu0 %1102
        %1106 = vset.pattern.permute.xlu0 0
        %1107 = vperm.xlu0 %1106, %v1089
        %v1108 = vpop.permute.xlu0 %1107
        %1111 = vset.pattern.permute.xlu0 0
        %1112 = vperm.xlu0 %1111, %v1090
        %v1113 = vpop.permute.xlu0 %1112
        %1116 = vset.pattern.permute.xlu0 0
        %1117 = vperm.xlu0 %1116, %v1091
        %v1118 = vpop.permute.xlu0 %1117
        %1121 = vset.pattern.permute.xlu0 0
        %1122 = vperm.xlu0 %1121, %v1092
        %v1123 = vpop.permute.xlu0 %1122
        %1126 = vset.pattern.permute.xlu0 0
        %1127 = vperm.xlu0 %1126, %v1093
        %v1128 = vpop.permute.xlu0 %1127
        %1131 = vset.pattern.permute.xlu0 0
        %1132 = vperm.xlu0 %1131, %v1094
        %v1133 = vpop.permute.xlu0 %1132
        %v1135 = vsub.f32 %v1079, %v1098
        %v1136 = vsub.f32 %v1080, %v1103
        %v1137 = vsub.f32 %v1081, %v1108
        %v1138 = vsub.f32 %v1082, %v1113
        %v1139 = vsub.f32 %v1083, %v1118
        %v1140 = vsub.f32 %v1084, %v1123
        %v1141 = vsub.f32 %v1085, %v1128
        %v1142 = vsub.f32 %v1086, %v1133
        %v1143 = vld [vmem:[%s292] sm:$0x1]
        %v1145 = vlaneseq
        %v1146 = vshrl.u32 %v1145, 7
        %v1147 = vsub.s32 0, %v1146
        %v1148 = vrot.slane %v1143, %v1147
        %v1150 = vsub.f32 %v1135, %v1148
        %v1151 = vsub.f32 %v1136, %v1148
        %v1152 = vsub.f32 %v1137, %v1148
        %v1153 = vsub.f32 %v1138, %v1148
        %v1154 = vsub.f32 %v1139, %v1148
        %v1155 = vsub.f32 %v1140, %v1148
        %v1156 = vsub.f32 %v1141, %v1148
        %v1157 = vsub.f32 %v1142, %v1148
        %1158 = vst [vmem:[%s265] sm:$0xff] %v1150
        %1159 = vst [vmem:[%s265 + $0x8] sm:$0xff] %v1151
        %1160 = vst [vmem:[%s265 + $0x10] sm:$0xff] %v1152
        %1161 = vst [vmem:[%s265 + $0x18] sm:$0xff] %v1153
        %1162 = vst [vmem:[%s265 + $0x20] sm:$0xff] %v1154
        %1163 = vst [vmem:[%s265 + $0x28] sm:$0xff] %v1155
        %1164 = vst [vmem:[%s265 + $0x30] sm:$0xff] %v1156
        %1165 = vst [vmem:[%s265 + $0x38] sm:$0xff] %v1157
        %s1166 = sand.u32 %s148, 1
        %s1167 = scalar_lea.sflag [#allocation3], %s1166
        %s1168 = sand.u32 %s148, 1
        %s1169 = smul.addr %s1168, 64
        %s1170 = scalar_lea.vmem [#allocation2], %s1169
        // Predicated region
        $region37: #{tpu_custom_call.1} parent=35 // pred_check
          %p1171 = pneg %p158
        $region38: #{tpu_custom_call.1} parent=35 // pred_check_branch
          %1173 = sbr.rel (%p1171) target = $region40
        $region39: #{tpu_custom_call.1} parent=35 // pred_region
          %s1174 = smul.u32 8, %s23
          %s1176 = ssub.s32 1024, 1024
          %1177 = vsyncadd %s1167, %s1176
          %s1178 = smul.addr %s22, 16
          %s1179 = sadd.s32 %s1174, %s1178
          %s1180 = smul.addr %s1179, 128
          %s1181 = scalar_lea.hbm %s4, %s1180
          %s1182 = sshll.u32 %s1170, 4
          %s1183 = int_to_ptr.vmem [resolvable:$true] %s1182
          %1188 = dma.vmem_to_hbm [thread:$0]  %s1183, 1024, %s1181, %s1167, 128, 128, 8
        $region40: #{tpu_custom_call.1} parent=35 // pred_fallthru
          _
      $region36: #{tpu_custom_call.1} parent=5 // pred_fallthru
        _
      %p1189 = scmp.le.s32.totalorder 2, %s13
      // Predicated region
      $region41: #{tpu_custom_call.1} parent=5 // pred_check
        %p1190 = pneg %p1189
      $region42: #{tpu_custom_call.1} parent=5 // pred_check_branch
        %1192 = sbr.rel (%p1190) target = $region44
      $region43: #{tpu_custom_call.1} parent=5 // pred_region
        %s1193 = ssub.s32 %s13, 2
        // Predicated region
        $region45: #{tpu_custom_call.1} parent=43 // pred_check
          %p1194 = pneg %p164
        $region46: #{tpu_custom_call.1} parent=43 // pred_check_branch
          %1196 = sbr.rel (%p1194) target = $region48
        $region47: #{tpu_custom_call.1} parent=43 // pred_region
          %s1197 = sand.u32 %s149, 1
          %s1198 = scalar_lea.sflag [#allocation3], %s1197
          %s1199 = sand.u32 %s149, 1
          %s1200 = smul.addr %s1199, 64
          %s1201 = scalar_lea.vmem [#allocation2], %s1200
          %1202 = dma.done %s1198, 1024
        $region48: #{tpu_custom_call.1} parent=43 // pred_fallthru
          _
      $region44: #{tpu_custom_call.1} parent=5 // pred_fallthru
        _
    $region6: #{tpu_custom_call.1} parent=1 // loop_footer
      %s17 = sadd.s32 1, %s13
    $region7: #{tpu_custom_call.1} parent=1 // loop_footer_branch
      %12 = sbr.rel target = $region3
    $region8: #{tpu_custom_call.1} parent=1 // loop_exit
      _
    %1203 = vsyncpa [#allocation3], 1
    %s1204 = scalar_lea.sflag [#allocation3], 1
    %1205 = vsyncpa %s1204, 1

</llo_original>
